<compile_context>
chip_gen: v7x
topology: tpu7x:2x2x1
jax: 0.10.0
libtpu: 0.0.40
codegen_flags: <defaults>
</compile_context>

<pallas_src>
import functools

import jax
import jax.numpy as jnp
from jax import lax
from jax.experimental import pallas as pl
from jax.experimental.pallas import tpu as pltpu


def _round_up(n, m):
    return ((n + m - 1) // m) * m


def _act_dtype():
    """bf16 elementwise epilogues on v6e/v7x; f32 elsewhere (v5e has no bf16 VALU)."""
    try:
        kind = jax.devices()[0].device_kind.lower()
    except Exception:
        return jnp.float32
    if "v6" in kind or "v7" in kind:
        return jnp.bfloat16
    return jnp.float32


def _derive_tiles(B, in_dim, *, tb=None, chunk=1024):
    """Pick (b_pad, tb, chunk, grid): 128-aligned batch pad, ~4 MiB f32 x tiles,
    compute chunks that divide tb, and >=2 grid steps when there is enough data."""
    b_pad = _round_up(B, 128)
    chunk = min(_round_up(chunk, 128), b_pad)          # multiple of 128, <= b_pad
    if tb is None:
        # ~4 MiB of f32 x per tile; with double buffering this stays far below
        # v7x's 64 MiB per-TC VMEM while amortizing the ~0.35 us per-step overhead.
        tb = max(chunk, (4 << 20) // (in_dim * 4))
    tb = max(chunk, (tb // chunk) * chunk)              # multiple of chunk
    tb = min(tb, pl.cdiv(b_pad, chunk) * chunk)         # don't exceed the data
    # v7x megacore: make sure there are >=2 grid steps when the batch allows it.
    if pl.cdiv(b_pad, tb) == 1 and b_pad > chunk:
        tb = max(chunk, pl.cdiv(pl.cdiv(b_pad, 2), chunk) * chunk)
    grid = pl.cdiv(b_pad, tb)
    return b_pad, tb, chunk, grid


def mlp_kernel(x_ref, w1_ref, b1_ref, w2_ref, b2_ref, w3_ref, b3_ref, o_ref, *, chunk):
    # x_ref: (tb, in_dim) f32   o_ref: (1, tb) f32
    # w1: (64, in_dim) bf16  b1: (64, 1)   w2: (32, 64) bf16  b2: (32, 1)
    # w3: (1, 32)  bf16      b3: (1, 1) f32
    nchunks = x_ref.shape[0] // chunk

    @pl.loop(0, nchunks)
    def _(c):
        r0 = pl.multiple_of(c * chunk, chunk)
        # In-kernel f32 -> bf16 cast of the x chunk (no extra HBM pass in the wrapper).
        xc = x_ref[pl.ds(r0, chunk), :].astype(jnp.bfloat16)            # (CH, in_dim)

        # Layer 1, computed transposed so the batch lands on lanes:
        # (64, in_dim) x (CH, in_dim)^T -> (64, CH), f32 MXU accumulation.
        h1 = lax.dot_general(w1_ref[...], xc,
                             dimension_numbers=(((1,), (1,)), ((), ())),
                             preferred_element_type=jnp.float32)
        h1 = jnp.maximum(h1.astype(b1_ref.dtype) + b1_ref[...], 0.0)    # bias + ReLU
        h1 = h1.astype(jnp.bfloat16)

        # Layer 2: (32, 64) @ (64, CH) -> (32, CH).
        h2 = jnp.dot(w2_ref[...], h1, preferred_element_type=jnp.float32)
        h2 = jnp.maximum(h2.astype(b2_ref.dtype) + b2_ref[...], 0.0)
        h2 = h2.astype(jnp.bfloat16)

        # Layer 3 + sigmoid, kept in f32 on all chips: (1, 32) @ (32, CH) -> (1, CH).
        z = jnp.dot(w3_ref[...], h2, preferred_element_type=jnp.float32)
        z = z + b3_ref[...]
        o_ref[:, pl.ds(r0, chunk)] = jax.nn.sigmoid(z).astype(o_ref.dtype)


def mlp_forward(x, params, *, tb=None, chunk=1024):
    """x: (B, in_dim) float32. Returns (B, 1) float32 probabilities."""
    B, in_dim = x.shape
    b_pad, tb, chunk, grid = _derive_tiles(B, in_dim, tb=tb, chunk=chunk)

    # Align the batch only to the 128-lane tile (<=127 pad rows); the ragged last
    # grid block (b_pad % tb != 0) is clipped by Pallas on read and writeback.
    x_in = x if b_pad == B else jnp.pad(x, ((0, b_pad - B), (0, 0)))

    act_dtype = _act_dtype()
    w1 = params["w1"].astype(jnp.bfloat16)   # (64, in_dim) PyTorch (out, in) layout
    w2 = params["w2"].astype(jnp.bfloat16)   # (32, 64)
    w3 = params["w3"].astype(jnp.bfloat16)   # (1, 32)
    b1 = params["b1"].astype(act_dtype)      # (64, 1)
    b2 = params["b2"].astype(act_dtype)      # (32, 1)
    b3 = params["b3"].astype(jnp.float32)    # (1, 1) -- final epilogue stays f32

    const = lambda a: pl.BlockSpec(a.shape, lambda i: (0, 0))   # VMEM-resident

    # Scoped VMEM sized from the actual footprint (defaults: 16 MiB v5e / 32 MiB v6e),
    # clamped well under v7x's 64 MiB per-TC physical VMEM.
    vmem_bytes = (2 * tb * in_dim * 4        # double-buffered f32 x tiles
                  + 2 * tb * 4               # double-buffered f32 (1, tb) out tiles
                  + chunk * 96 * 8           # per-chunk h1/h2 intermediates (generous)
                  + (2 << 20))               # weights/biases + headroom
    vmem_limit = int(min(max(vmem_bytes, 24 << 20), 48 << 20))

    out = pl.pallas_call(
        functools.partial(mlp_kernel, chunk=chunk),
        out_shape=jax.ShapeDtypeStruct((1, b_pad), jnp.float32),
        grid=(grid,),
        in_specs=[
            pl.BlockSpec((tb, in_dim), lambda i: (i, 0)),   # batch-tiled f32 x
            const(w1), const(b1),
            const(w2), const(b2),
            const(w3), const(b3),
        ],
        out_specs=pl.BlockSpec((1, tb), lambda i: (0, i)),  # lane-dense output
        compiler_params=pltpu.CompilerParams(
            dimension_semantics=("parallel",),              # spans both v7x TCs
            vmem_limit_bytes=vmem_limit,
        ),
    )(x_in, w1, b1, w2, b2, w3, b3)

    # (1, b_pad) lane-dense slab -> (B, 1): row-major reshape, free plumbing.
    return out.reshape(b_pad, 1)[:B]


def init_params(key, in_dim):
    """PyTorch nn.Linear-style init (uniform +/- 1/sqrt(fan_in)), (out, in) layout."""
    k = jax.random.split(key, 6)

    def u(kk, shape, fan_in):
        bound = 1.0 / (fan_in ** 0.5)
        return jax.random.uniform(kk, shape, jnp.float32, minval=-bound, maxval=bound)

    return {
        "w1": u(k[0], (64, in_dim), in_dim), "b1": u(k[1], (64, 1), in_dim),
        "w2": u(k[2], (32, 64), 64),         "b2": u(k[3], (32, 1), 64),
        "w3": u(k[4], (1, 32), 32),          "b3": u(k[5], (1, 1), 32),
    }


def mlp_reference(x, params):
    """Pure-JAX f32 reference with the original module's semantics."""
    h1 = jnp.maximum(x @ params["w1"].T + params["b1"].T, 0.0)
    h2 = jnp.maximum(h1 @ params["w2"].T + params["b2"].T, 0.0)
    return jax.nn.sigmoid(h2 @ params["w3"].T + params["b3"].T)


if __name__ == "__main__":
    key = jax.random.PRNGKey(0)
    key, kx, kp = jax.random.split(key, 3)

    batch, in_dim = 8, 32
    x = jax.random.normal(kx, (batch, in_dim), jnp.float32)
    params = init_params(kp, in_dim)

    out = jax.block_until_ready(mlp_forward(x, params))
    ref = mlp_reference(x, params)

    assert out.shape == (batch, 1)
    # bf16 matmul operands (and bf16 bias/ReLU epilogues on v6e/v7x) with f32 MXU
    # accumulation vs. a pure-f32 reference; output is a sigmoid in (0, 1).
    assert jnp.allclose(out, ref, atol=1e-2, rtol=0.0), "mismatch vs reference"

    print("KERNEL_OK")
</pallas_src>

<mosaic_0001>
module attributes {stable_mosaic.version = 11 : i64} {
  func.func @mlp_kernel(%arg0: i32, %arg1: memref<128x32xf32, #tpu.memory_space<vmem>>, %arg2: memref<64x32xbf16, #tpu.memory_space<vmem>>, %arg3: memref<64x1xf32, #tpu.memory_space<vmem>>, %arg4: memref<32x64xbf16, #tpu.memory_space<vmem>>, %arg5: memref<32x1xf32, #tpu.memory_space<vmem>>, %arg6: memref<1x32xbf16, #tpu.memory_space<vmem>>, %arg7: memref<1x1xf32, #tpu.memory_space<vmem>>, %arg8: memref<1x128xf32, #tpu.memory_space<vmem>>) attributes {dimension_semantics = [#tpu.dimension_semantics<parallel>], iteration_bounds = array<i64: 1>, scalar_prefetch = 0 : i64, scratch_operands = 0 : i64, tpu.core_type = #tpu.core_type<tc>, window_params = [{transform_indices = @transform_0, window_bounds = array<i64: 128, 32>}, {pipeline_mode = #tpu.pipeline_mode<synchronous>, transform_indices = @transform_1, window_bounds = array<i64: 64, 32>}, {pipeline_mode = #tpu.pipeline_mode<synchronous>, transform_indices = @transform_2, window_bounds = array<i64: 64, 1>}, {pipeline_mode = #tpu.pipeline_mode<synchronous>, transform_indices = @transform_3, window_bounds = array<i64: 32, 64>}, {pipeline_mode = #tpu.pipeline_mode<synchronous>, transform_indices = @transform_4, window_bounds = array<i64: 32, 1>}, {pipeline_mode = #tpu.pipeline_mode<synchronous>, transform_indices = @transform_5, window_bounds = array<i64: 1, 32>}, {pipeline_mode = #tpu.pipeline_mode<synchronous>, transform_indices = @transform_6, window_bounds = array<i64: 1, 1>}, {transform_indices = @transform_7, window_bounds = array<i64: 1, 128>}]} {
    %c0_i32 = arith.constant 0 : i32
    %c1_i32 = arith.constant 1 : i32
    %0 = arith.muli %c0_i32, %c1_i32 : i32
    %c0_i32_0 = arith.constant 0 : i32
    %1 = arith.addi %c0_i32_0, %0 : i32
    %c128_i32 = arith.constant 128 : i32
    %2 = arith.muli %1, %c128_i32 : i32
    %3 = tpu.assume_multiple %2, 128 : i32
    %4 = arith.index_cast %3 : i32 to index
    %c0 = arith.constant 0 : index
    %5 = vector.load %arg1[%4, %c0] : memref<128x32xf32, #tpu.memory_space<vmem>>, vector<128x32xf32>
    %6 = arith.truncf %5 : vector<128x32xf32> to vector<128x32xbf16>
    %c0_1 = arith.constant 0 : index
    %c0_2 = arith.constant 0 : index
    %7 = vector.load %arg2[%c0_1, %c0_2] : memref<64x32xbf16, #tpu.memory_space<vmem>>, vector<64x32xbf16>
    %cst = arith.constant dense<0.000000e+00> : vector<64x128xf32>
    %8 = tpu.matmul %7, %6, %cst {dimension_numbers = #tpu.dot_dimension_numbers<[1], [1], [0], [0], [0, 0, 1, 0], [], []>} : vector<64x32xbf16>, vector<128x32xbf16>, vector<64x128xf32> -> vector<64x128xf32>
    %c0_3 = arith.constant 0 : index
    %c0_4 = arith.constant 0 : index
    %9 = vector.load %arg3[%c0_3, %c0_4] : memref<64x1xf32, #tpu.memory_space<vmem>>, vector<64x1xf32>
    %10 = vector.broadcast %9 : vector<64x1xf32> to vector<64x128xf32>
    %11 = arith.addf %8, %10 : vector<64x128xf32>
    %cst_5 = arith.constant 0.000000e+00 : f32
    %12 = vector.broadcast %cst_5 : f32 to vector<64x128xf32>
    %13 = arith.maximumf %11, %12 : vector<64x128xf32>
    %14 = arith.truncf %13 : vector<64x128xf32> to vector<64x128xbf16>
    %c0_6 = arith.constant 0 : index
    %c0_7 = arith.constant 0 : index
    %15 = vector.load %arg4[%c0_6, %c0_7] : memref<32x64xbf16, #tpu.memory_space<vmem>>, vector<32x64xbf16>
    %cst_8 = arith.constant dense<0.000000e+00> : vector<32x128xf32>
    %16 = tpu.matmul %15, %14, %cst_8 {dimension_numbers = #tpu.dot_dimension_numbers<[1], [0], [0], [1], [0, 0, 1, 1], [], []>} : vector<32x64xbf16>, vector<64x128xbf16>, vector<32x128xf32> -> vector<32x128xf32>
    %c0_9 = arith.constant 0 : index
    %c0_10 = arith.constant 0 : index
    %17 = vector.load %arg5[%c0_9, %c0_10] : memref<32x1xf32, #tpu.memory_space<vmem>>, vector<32x1xf32>
    %18 = vector.broadcast %17 : vector<32x1xf32> to vector<32x128xf32>
    %19 = arith.addf %16, %18 : vector<32x128xf32>
    %cst_11 = arith.constant 0.000000e+00 : f32
    %20 = vector.broadcast %cst_11 : f32 to vector<32x128xf32>
    %21 = arith.maximumf %19, %20 : vector<32x128xf32>
    %22 = arith.truncf %21 : vector<32x128xf32> to vector<32x128xbf16>
    %c0_12 = arith.constant 0 : index
    %c0_13 = arith.constant 0 : index
    %23 = vector.load %arg6[%c0_12, %c0_13] : memref<1x32xbf16, #tpu.memory_space<vmem>>, vector<1x32xbf16>
    %cst_14 = arith.constant dense<0.000000e+00> : vector<1x128xf32>
    %24 = tpu.matmul %23, %22, %cst_14 {dimension_numbers = #tpu.dot_dimension_numbers<[1], [0], [0], [1], [0, 0, 1, 1], [], []>} : vector<1x32xbf16>, vector<32x128xbf16>, vector<1x128xf32> -> vector<1x128xf32>
    %c0_15 = arith.constant 0 : index
    %c0_16 = arith.constant 0 : index
    %25 = vector.load %arg7[%c0_15, %c0_16] : memref<1x1xf32, #tpu.memory_space<vmem>>, vector<1x1xf32>
    %26 = vector.broadcast %25 : vector<1x1xf32> to vector<1x128xf32>
    %27 = arith.addf %24, %26 : vector<1x128xf32>
    %28 = arith.negf %27 : vector<1x128xf32>
    %29 = math.exp %28 : vector<1x128xf32>
    %cst_17 = arith.constant 1.000000e+00 : f32
    %30 = vector.broadcast %cst_17 : f32 to vector<1x128xf32>
    %31 = arith.addf %30, %29 : vector<1x128xf32>
    %32 = arith.divf %30, %31 : vector<1x128xf32>
    %c0_18 = arith.constant 0 : index
    %33 = arith.index_cast %3 : i32 to index
    %34 = vector.load %arg8[%c0_18, %33] : memref<1x128xf32, #tpu.memory_space<vmem>>, vector<1x128xf32>
    tpu.vector_store %arg8[%c0_18, %33], %32 {strides = array<i32>} : memref<1x128xf32, #tpu.memory_space<vmem>>, vector<1x128xf32>,
    %c1_i32_19 = arith.constant 1 : i32
    return
  }
  func.func @transform_0(%arg0: i32) -> (i32, i32) {
    %c0_i32 = arith.constant 0 : i32
    %c0_i32_0 = arith.constant 0 : i32
    return %arg0, %c0_i32 : i32, i32
  }
  func.func @transform_1(%arg0: i32) -> (i32, i32) {
    %c0_i32 = arith.constant 0 : i32
    %c0_i32_0 = arith.constant 0 : i32
    %c0_i32_1 = arith.constant 0 : i32
    return %c0_i32, %c0_i32_0 : i32, i32
  }
  func.func @transform_2(%arg0: i32) -> (i32, i32) {
    %c0_i32 = arith.constant 0 : i32
    %c0_i32_0 = arith.constant 0 : i32
    %c0_i32_1 = arith.constant 0 : i32
    return %c0_i32, %c0_i32_0 : i32, i32
  }
  func.func @transform_3(%arg0: i32) -> (i32, i32) {
    %c0_i32 = arith.constant 0 : i32
    %c0_i32_0 = arith.constant 0 : i32
    %c0_i32_1 = arith.constant 0 : i32
    return %c0_i32, %c0_i32_0 : i32, i32
  }
  func.func @transform_4(%arg0: i32) -> (i32, i32) {
    %c0_i32 = arith.constant 0 : i32
    %c0_i32_0 = arith.constant 0 : i32
    %c0_i32_1 = arith.constant 0 : i32
    return %c0_i32, %c0_i32_0 : i32, i32
  }
  func.func @transform_5(%arg0: i32) -> (i32, i32) {
    %c0_i32 = arith.constant 0 : i32
    %c0_i32_0 = arith.constant 0 : i32
    %c0_i32_1 = arith.constant 0 : i32
    return %c0_i32, %c0_i32_0 : i32, i32
  }
  func.func @transform_6(%arg0: i32) -> (i32, i32) {
    %c0_i32 = arith.constant 0 : i32
    %c0_i32_0 = arith.constant 0 : i32
    %c0_i32_1 = arith.constant 0 : i32
    return %c0_i32, %c0_i32_0 : i32, i32
  }
  func.func @transform_7(%arg0: i32) -> (i32, i32) {
    %c0_i32 = arith.constant 0 : i32
    %c0_i32_0 = arith.constant 0 : i32
    return %c0_i32, %arg0 : i32, i32
  }
}

</mosaic_0001>

<llo_original>
// kernel: tpu_custom_call.1
$region0: #{tpu_custom_call.1}
  #allocation0 [shape = 'u32[]', space=smem, size = 0x4, offset = 0x4, fixed_abs, tag = 'smem constant byte address 0x4 - core index']
  #allocation1 [shape = 'u32[144,128]{1,0:T(1,128)}', space=vmem, size = 0x12000, scoped, tag = 'internal scratch']
  #allocation2 [shape = 'f32[1,1]{1,0:T(1,128)S(1)}', space=vmem, size = 0x200, scoped, tag = 'scoped memory for tpu_custom_call.1']
  %s0 = inlined_call_operand.vmem [shape: f32[128,32], index: 0, kind: input, shape index: {}]
  %s1 = inlined_call_operand.vmem [shape: bf16[64,32], index: 1, kind: input, shape index: {}]
  %s2 = inlined_call_operand.vmem [shape: f32[64,1], index: 2, kind: input, shape index: {}]
  %s3 = inlined_call_operand.vmem [shape: bf16[32,64], index: 3, kind: input, shape index: {}]
  %s4 = inlined_call_operand.vmem [shape: f32[32,1], index: 4, kind: input, shape index: {}]
  %s5 = inlined_call_operand.vmem [shape: bf16[1,32], index: 5, kind: input, shape index: {}]
  %s6 = inlined_call_operand.<no memory space> [shape: f32[1,1], index: 6, kind: input, shape index: {}]
  %s7 = inlined_call_operand.hbm [shape: f32[1,128], index: 7, kind: output, shape index: {}]
  %s8 = sld [smem:[#allocation0]]
  $region38: #{tpu_custom_call.1} parent=0
    _
  %s10 = ssub.s32 1, %s8
  %s11 = scalar_select 0, %s10, %s8
  %v12 = vstv %s6
  %13 = vst [vmem:[#allocation2] sm:$0x1] %v12
  $region1: #{tpu_custom_call.1} parent=0
    #allocation3 [shape = 'u8[512]{0}', space=vmem, size = 0x400, scoped, tag = 'output window, operand 0, single buffered']
    #allocation4 [shape = 's32[1]{0}', space=sflag, size = 0x4, scoped, tag = 'scoped memory for tpu_custom_call.1']
    %14 = vsyncpa [#allocation4], 0
    // Predicated region
    $region2: #{tpu_custom_call.1} parent=1 // pred_check
      _
    $region3: #{tpu_custom_call.1} parent=1 // pred_check_branch
      %16 = sbr.rel (0) target = $region5
    $region4: #{tpu_custom_call.1} parent=1 // pred_region
      _
    $region5: #{tpu_custom_call.1} parent=1 // pred_fallthru
      _
    // Predicated region
    $region6: #{tpu_custom_call.1} parent=1 // pred_check
      _
    $region7: #{tpu_custom_call.1} parent=1 // pred_check_branch
      %18 = sbr.rel (0) target = $region9
    $region8: #{tpu_custom_call.1} parent=1 // pred_region
      _
    $region9: #{tpu_custom_call.1} parent=1 // pred_fallthru
      _
    // Predicated region
    $region10: #{tpu_custom_call.1} parent=1 // pred_check
      _
    $region11: #{tpu_custom_call.1} parent=1 // pred_check_branch
      %20 = sbr.rel (0) target = $region13
    $region12: #{tpu_custom_call.1} parent=1 // pred_region
      _
    $region13: #{tpu_custom_call.1} parent=1 // pred_fallthru
      _
    // Predicated region
    $region14: #{tpu_custom_call.1} parent=1 // pred_check
      _
    $region15: #{tpu_custom_call.1} parent=1 // pred_check_branch
      %22 = sbr.rel (0) target = $region17
    $region16: #{tpu_custom_call.1} parent=1 // pred_region
      _
    $region17: #{tpu_custom_call.1} parent=1 // pred_fallthru
      _
    // Predicated region
    $region18: #{tpu_custom_call.1} parent=1 // pred_check
      _
    $region19: #{tpu_custom_call.1} parent=1 // pred_check_branch
      %24 = sbr.rel (0) target = $region21
    $region20: #{tpu_custom_call.1} parent=1 // pred_region
      _
    $region21: #{tpu_custom_call.1} parent=1 // pred_fallthru
      _
    // Predicated region
    $region22: #{tpu_custom_call.1} parent=1 // pred_check
      _
    $region23: #{tpu_custom_call.1} parent=1 // pred_check_branch
      %26 = sbr.rel (0) target = $region25
    $region24: #{tpu_custom_call.1} parent=1 // pred_region
      _
    $region25: #{tpu_custom_call.1} parent=1 // pred_fallthru
      _
    // Predicated region
    $region26: #{tpu_custom_call.1} parent=1 // pred_check
      _
    $region27: #{tpu_custom_call.1} parent=1 // pred_check_branch
      %28 = sbr.rel (0) target = $region29
    $region28: #{tpu_custom_call.1} parent=1 // pred_region
      _
    $region29: #{tpu_custom_call.1} parent=1 // pred_fallthru
      _
    %v30 = vld [vmem:[%s0] sm:$0xff]
    %v31 = vld [vmem:[%s0 + $0x8] sm:$0xff]
    %v32 = vld [vmem:[%s0 + $0x10] sm:$0xff]
    %v33 = vld [vmem:[%s0 + $0x18] sm:$0xff]
    %v34 = vld [vmem:[%s0 + $0x20] sm:$0xff]
    %v35 = vld [vmem:[%s0 + $0x28] sm:$0xff]
    %v36 = vld [vmem:[%s0 + $0x30] sm:$0xff]
    %v37 = vld [vmem:[%s0 + $0x38] sm:$0xff]
    %v38 = vld [vmem:[%s0 + $0x40] sm:$0xff]
    %v39 = vld [vmem:[%s0 + $0x48] sm:$0xff]
    %v40 = vld [vmem:[%s0 + $0x50] sm:$0xff]
    %v41 = vld [vmem:[%s0 + $0x58] sm:$0xff]
    %v42 = vld [vmem:[%s0 + $0x60] sm:$0xff]
    %v43 = vld [vmem:[%s0 + $0x68] sm:$0xff]
    %v44 = vld [vmem:[%s0 + $0x70] sm:$0xff]
    %v45 = vld [vmem:[%s0 + $0x78] sm:$0xff]
    %v46 = vpack.c.bf16 %v31, %v30
    %v47 = vpack.c.bf16 %v33, %v32
    %v48 = vpack.c.bf16 %v35, %v34
    %v49 = vpack.c.bf16 %v37, %v36
    %v50 = vpack.c.bf16 %v39, %v38
    %v51 = vpack.c.bf16 %v41, %v40
    %v52 = vpack.c.bf16 %v43, %v42
    %v53 = vpack.c.bf16 %v45, %v44
    %v54 = vld [vmem:[%s1] sm:$0xf]
    %v55 = vld [vmem:[%s1 + $0x4] sm:$0xf]
    %v56 = vld [vmem:[%s1 + $0x8] sm:$0xf]
    %v57 = vld [vmem:[%s1 + $0xc] sm:$0xf]
    %v58 = vld [vmem:[%s1 + $0x10] sm:$0xf]
    %v59 = vld [vmem:[%s1 + $0x14] sm:$0xf]
    %v60 = vld [vmem:[%s1 + $0x18] sm:$0xf]
    %v61 = vld [vmem:[%s1 + $0x1c] sm:$0xf]
    %v62 = vld [vmem:[%s2] sm:$0xff]
    %v63 = vld [vmem:[%s2 + $0x8] sm:$0xff]
    %v64 = vld [vmem:[%s2 + $0x10] sm:$0xff]
    %v65 = vld [vmem:[%s2 + $0x18] sm:$0xff]
    %v66 = vld [vmem:[%s2 + $0x20] sm:$0xff]
    %v67 = vld [vmem:[%s2 + $0x28] sm:$0xff]
    %v68 = vld [vmem:[%s2 + $0x30] sm:$0xff]
    %v69 = vld [vmem:[%s2 + $0x38] sm:$0xff]
    %71 = vset.pattern.permute.xlu0 0
    %72 = vperm.xlu0 %71, %v62
    %v73 = vpop.permute.xlu0 %72
    %76 = vset.pattern.permute.xlu0 0
    %77 = vperm.xlu0 %76, %v63
    %v78 = vpop.permute.xlu0 %77
    %81 = vset.pattern.permute.xlu0 0
    %82 = vperm.xlu0 %81, %v64
    %v83 = vpop.permute.xlu0 %82
    %86 = vset.pattern.permute.xlu0 0
    %87 = vperm.xlu0 %86, %v65
    %v88 = vpop.permute.xlu0 %87
    %91 = vset.pattern.permute.xlu0 0
    %92 = vperm.xlu0 %91, %v66
    %v93 = vpop.permute.xlu0 %92
    %96 = vset.pattern.permute.xlu0 0
    %97 = vperm.xlu0 %96, %v67
    %v98 = vpop.permute.xlu0 %97
    %101 = vset.pattern.permute.xlu0 0
    %102 = vperm.xlu0 %101, %v68
    %v103 = vpop.permute.xlu0 %102
    %106 = vset.pattern.permute.xlu0 0
    %107 = vperm.xlu0 %106, %v69
    %v108 = vpop.permute.xlu0 %107
    %v118 = vunpack.c.l.b16 %v54
    %v119 = vunpack.c.l.b16 %v55
    %v120 = vunpack.c.l.b16 %v56
    %v121 = vunpack.c.l.b16 %v57
    %v122 = vunpack.c.l.b16 %v58
    %v123 = vunpack.c.l.b16 %v59
    %v124 = vunpack.c.l.b16 %v60
    %v125 = vunpack.c.l.b16 %v61
    %v126 = vpack.c.b16 %v119, %v118
    %v127 = vpack.c.b16 %v121, %v120
    %v128 = vpack.c.b16 %v123, %v122
    %v129 = vpack.c.b16 %v125, %v124
    %vm130 = vcmask 261120
    %v132 = vsel %vm130, %v126, 0
    %v135 = vsel %vm130, %v127, 0
    %v138 = vsel %vm130, %v128, 0
    %v141 = vsel %vm130, %v129, 0
    %v144 = vsel %vm130, %v46, 0
    %v147 = vsel %vm130, %v47, 0
    %v150 = vsel %vm130, %v48, 0
    %v153 = vsel %vm130, %v49, 0
    %v156 = vsel %vm130, %v50, 0
    %v159 = vsel %vm130, %v51, 0
    %v162 = vsel %vm130, %v52, 0
    %v165 = vsel %vm130, %v53, 0
    %167 = vmatprep.subr.bf16.mxu0 0
    %168 = vmatpush1.bf16.xpose.msra.mxu0 %v144
    %169 = vmatprep.subr.bf16.mxu0 0
    %170 = vmatpush1.bf16.xpose.msra.mxu0 %v147
    %171 = vmatprep.subr.bf16.mxu0 0
    %172 = vmatpush1.bf16.xpose.msra.mxu0 %v150
    %173 = vmatprep.subr.bf16.mxu0 0
    %174 = vmatpush1.bf16.xpose.msra.mxu0 %v153
    %175 = vmatprep.subr.bf16.mxu0 0
    %176 = vmatpush1.bf16.xpose.msra.mxu0 %v156
    %177 = vmatprep.subr.bf16.mxu0 0
    %178 = vmatpush1.bf16.xpose.msra.mxu0 %v159
    %179 = vmatprep.subr.bf16.mxu0 0
    %180 = vmatpush1.bf16.xpose.msra.mxu0 %v162
    %181 = vmatprep.subr.bf16.mxu0 0
    %182 = vmatpush1.bf16.xpose.msra.mxu0 %v165
    %183 = vmatprep.subr.bf16.mxu0 0
    %184 = vmatpush1.bf16.xpose.msra.mxu0 0
    %185 = vmatprep.subr.bf16.mxu0 0
    %186 = vmatpush1.bf16.xpose.msra.mxu0 0
    %187 = vmatprep.subr.bf16.mxu0 0
    %188 = vmatpush1.bf16.xpose.msra.mxu0 0
    %189 = vmatprep.subr.bf16.mxu0 0
    %190 = vmatpush1.bf16.xpose.msra.mxu0 0
    %191 = vmatprep.subr.bf16.mxu0 0
    %192 = vmatpush1.bf16.xpose.msra.mxu0 0
    %193 = vmatprep.subr.bf16.mxu0 0
    %194 = vmatpush1.bf16.xpose.msra.mxu0 0
    %195 = vmatprep.subr.bf16.mxu0 0
    %196 = vmatpush1.bf16.xpose.msra.mxu0 0
    %197 = vmatprep.subr.bf16.mxu0 0
    %198 = vmatpush1.bf16.xpose.msra.mxu0 0
    %199 = vmatprep.mubr.bf16.mxu0 0
    %200 = vmatmul.mubr.bf16.gmra.mrb[0].mxu0 %v132
    %v201 = vpop.f32.mrb[0].mxu0
    %v202 = vadd.f32 %v73, %v201
    %v203 = vpop.f32.mrb[0].mxu0
    %v204 = vpop.f32.mrb[0].mxu0
    %v205 = vadd.f32 %v78, %v204
    %v206 = vpop.f32.mrb[0].mxu0
    %207 = vmatprep.mubr.bf16.mxu0 0
    %208 = vmatmul.mubr.bf16.gmra.mrb[0].mxu0 %v135
    %v209 = vpop.f32.mrb[0].mxu0
    %v210 = vadd.f32 %v83, %v209
    %v211 = vpop.f32.mrb[0].mxu0
    %v212 = vpop.f32.mrb[0].mxu0
    %v213 = vadd.f32 %v88, %v212
    %v214 = vpop.f32.mrb[0].mxu0
    %215 = vmatprep.mubr.bf16.mxu0 0
    %216 = vmatmul.mubr.bf16.gmra.mrb[0].mxu0 %v138
    %v217 = vpop.f32.mrb[0].mxu0
    %v218 = vadd.f32 %v93, %v217
    %v219 = vpop.f32.mrb[0].mxu0
    %v220 = vpop.f32.mrb[0].mxu0
    %v221 = vadd.f32 %v98, %v220
    %v222 = vpop.f32.mrb[0].mxu0
    %223 = vmatprep.mubr.bf16.mxu0 0
    %224 = vmatmul.mubr.bf16.gmra.mrb[0].mxu0 %v141
    %v225 = vpop.f32.mrb[0].mxu0
    %v226 = vadd.f32 %v103, %v225
    %v227 = vpop.f32.mrb[0].mxu0
    %v228 = vpop.f32.mrb[0].mxu0
    %v229 = vadd.f32 %v108, %v228
    %v230 = vpop.f32.mrb[0].mxu0
    %231 = vdwg.mxu0
    %v232 = vmax.f32 %v202, 0.0
    %v233 = vmax.f32 %v205, 0.0
    %v234 = vmax.f32 %v210, 0.0
    %v235 = vmax.f32 %v213, 0.0
    %v236 = vmax.f32 %v218, 0.0
    %v237 = vmax.f32 %v221, 0.0
    %v238 = vmax.f32 %v226, 0.0
    %v239 = vmax.f32 %v229, 0.0
    %v240 = vpack.c.bf16 %v233, %v232
    %v241 = vpack.c.bf16 %v235, %v234
    %v242 = vpack.c.bf16 %v237, %v236
    %v243 = vpack.c.bf16 %v239, %v238
    %v244 = vld [vmem:[%s3] sm:$0xf]
    %v245 = vld [vmem:[%s3 + $0x4] sm:$0xf]
    %v246 = vld [vmem:[%s3 + $0x8] sm:$0xf]
    %v247 = vld [vmem:[%s3 + $0xc] sm:$0xf]
    %v248 = vld [vmem:[%s4] sm:$0xff]
    %v249 = vld [vmem:[%s4 + $0x8] sm:$0xff]
    %v250 = vld [vmem:[%s4 + $0x10] sm:$0xff]
    %v251 = vld [vmem:[%s4 + $0x18] sm:$0xff]
    %253 = vset.pattern.permute.xlu0 0
    %254 = vperm.xlu0 %253, %v248
    %v255 = vpop.permute.xlu0 %254
    %258 = vset.pattern.permute.xlu0 0
    %259 = vperm.xlu0 %258, %v249
    %v260 = vpop.permute.xlu0 %259
    %263 = vset.pattern.permute.xlu0 0
    %264 = vperm.xlu0 %263, %v250
    %v265 = vpop.permute.xlu0 %264
    %268 = vset.pattern.permute.xlu0 0
    %269 = vperm.xlu0 %268, %v251
    %v270 = vpop.permute.xlu0 %269
    %v276 = vunpack.c.l.b16 %v244
    %v277 = vunpack.c.l.b16 %v245
    %v278 = vunpack.c.l.b16 %v246
    %v279 = vunpack.c.l.b16 %v247
    %v280 = vpack.c.b16 %v277, %v276
    %v281 = vpack.c.b16 %v279, %v278
    %vm282 = vcmask 523264
    %v284 = vsel %vm282, %v280, 0
    %v287 = vsel %vm282, %v281, 0
    %289 = vmatprep.subr.bf16.mxu0 0
    %290 = vmatpush1.bf16.msra.mxu0 %v240
    %291 = vmatprep.subr.bf16.mxu0 0
    %292 = vmatpush1.bf16.msra.mxu0 %v241
    %293 = vmatprep.subr.bf16.mxu0 0
    %294 = vmatpush1.bf16.msra.mxu0 %v242
    %295 = vmatprep.subr.bf16.mxu0 0
    %296 = vmatpush1.bf16.msra.mxu0 %v243
    %297 = vmatprep.subr.bf16.mxu0 0
    %298 = vmatpush1.bf16.msra.mxu0 0
    %299 = vmatprep.subr.bf16.mxu0 0
    %300 = vmatpush1.bf16.msra.mxu0 0
    %301 = vmatprep.subr.bf16.mxu0 0
    %302 = vmatpush1.bf16.msra.mxu0 0
    %303 = vmatprep.subr.bf16.mxu0 0
    %304 = vmatpush1.bf16.msra.mxu0 0
    %305 = vmatprep.subr.bf16.mxu0 0
    %306 = vmatpush1.bf16.msra.mxu0 0
    %307 = vmatprep.subr.bf16.mxu0 0
    %308 = vmatpush1.bf16.msra.mxu0 0
    %309 = vmatprep.subr.bf16.mxu0 0
    %310 = vmatpush1.bf16.msra.mxu0 0
    %311 = vmatprep.subr.bf16.mxu0 0
    %312 = vmatpush1.bf16.msra.mxu0 0
    %313 = vmatprep.subr.bf16.mxu0 0
    %314 = vmatpush1.bf16.msra.mxu0 0
    %315 = vmatprep.subr.bf16.mxu0 0
    %316 = vmatpush1.bf16.msra.mxu0 0
    %317 = vmatprep.subr.bf16.mxu0 0
    %318 = vmatpush1.bf16.msra.mxu0 0
    %319 = vmatprep.subr.bf16.mxu0 0
    %320 = vmatpush1.bf16.msra.mxu0 0
    %321 = vmatprep.mubr.bf16.mxu0 0
    %322 = vmatmul.mubr.bf16.gmra.mrb[0].mxu0 %v284
    %v323 = vpop.f32.mrb[0].mxu0
    %v324 = vadd.f32 %v255, %v323
    %v325 = vpop.f32.mrb[0].mxu0
    %v326 = vpop.f32.mrb[0].mxu0
    %v327 = vadd.f32 %v260, %v326
    %v328 = vpop.f32.mrb[0].mxu0
    %329 = vmatprep.mubr.bf16.mxu0 0
    %330 = vmatmul.mubr.bf16.gmra.mrb[0].mxu0 %v287
    %v331 = vpop.f32.mrb[0].mxu0
    %v332 = vadd.f32 %v265, %v331
    %v333 = vpop.f32.mrb[0].mxu0
    %v334 = vpop.f32.mrb[0].mxu0
    %v335 = vadd.f32 %v270, %v334
    %v336 = vpop.f32.mrb[0].mxu0
    %337 = vdwg.mxu0
    %v338 = vmax.f32 %v324, 0.0
    %v339 = vmax.f32 %v327, 0.0
    %v340 = vmax.f32 %v332, 0.0
    %v341 = vmax.f32 %v335, 0.0
    %v342 = vpack.c.bf16 %v339, %v338
    %v343 = vpack.c.bf16 %v341, %v340
    %v344 = vld [vmem:[%s5] sm:$0x1]
    %v345 = vld [vmem:[#allocation2] sm:$0x1]
    %347 = vset.pattern.permute.xlu0 0
    %348 = vperm.xlu0 %347, %v345
    %v349 = vpop.permute.xlu0 %348
    %v351 = vlaneseq
    %v352 = vshrl.u32 %v351, 7
    %v353 = vsub.s32 0, %v352
    %v354 = vrot.slane %v349, %v353
    %v356 = vsel %vm130, %v344, 0
    %358 = vmatprep.subr.bf16.mxu0 0
    %359 = vmatpush1.bf16.msra.mxu0 %v342
    %360 = vmatprep.subr.bf16.mxu0 0
    %361 = vmatpush1.bf16.msra.mxu0 %v343
    %362 = vmatprep.subr.bf16.mxu0 0
    %363 = vmatpush1.bf16.msra.mxu0 0
    %364 = vmatprep.subr.bf16.mxu0 0
    %365 = vmatpush1.bf16.msra.mxu0 0
    %366 = vmatprep.subr.bf16.mxu0 0
    %367 = vmatpush1.bf16.msra.mxu0 0
    %368 = vmatprep.subr.bf16.mxu0 0
    %369 = vmatpush1.bf16.msra.mxu0 0
    %370 = vmatprep.subr.bf16.mxu0 0
    %371 = vmatpush1.bf16.msra.mxu0 0
    %372 = vmatprep.subr.bf16.mxu0 0
    %373 = vmatpush1.bf16.msra.mxu0 0
    %374 = vmatprep.subr.bf16.mxu0 0
    %375 = vmatpush1.bf16.msra.mxu0 0
    %376 = vmatprep.subr.bf16.mxu0 0
    %377 = vmatpush1.bf16.msra.mxu0 0
    %378 = vmatprep.subr.bf16.mxu0 0
    %379 = vmatpush1.bf16.msra.mxu0 0
    %380 = vmatprep.subr.bf16.mxu0 0
    %381 = vmatpush1.bf16.msra.mxu0 0
    %382 = vmatprep.subr.bf16.mxu0 0
    %383 = vmatpush1.bf16.msra.mxu0 0
    %384 = vmatprep.subr.bf16.mxu0 0
    %385 = vmatpush1.bf16.msra.mxu0 0
    %386 = vmatprep.subr.bf16.mxu0 0
    %387 = vmatpush1.bf16.msra.mxu0 0
    %388 = vmatprep.subr.bf16.mxu0 0
    %389 = vmatpush1.bf16.msra.mxu0 0
    %390 = vmatprep.mubr.bf16.mxu0 0
    %391 = vmatmul.mubr.bf16.gmra.mrb[0].mxu0 %v356
    %v392 = vpop.f32.mrb[0].mxu0
    %v393 = vadd.f32 %v354, %v392
    %v394 = vpop.f32.mrb[0].mxu0
    %v395 = vpop.f32.mrb[0].mxu0
    %v396 = vpop.f32.mrb[0].mxu0
    %397 = vdwg.mxu0
    %v398 = vxor.u32 %v393, 2147483648
    %v399 = vmul.f32 %v398, 1.442695
    %v400 = vpow.pop %v399
    %v401 = vadd.f32 %v400, 1.0
    %v402 = vrcp.pop %v401
    %v403 = vmul.f32 1.0, %v402
    %404 = vst [vmem:[#allocation3] sm:$0x1] %v403
    // Predicated region
    $region30: #{tpu_custom_call.1} parent=1 // pred_check
      _
    $region31: #{tpu_custom_call.1} parent=1 // pred_check_branch
      %406 = sbr.rel (0) target = $region33
    $region32: #{tpu_custom_call.1} parent=1 // pred_region
      %s408 = ssub.s32 16, 16
      %409 = vsyncadd [#allocation4], %s408
      %s411 = sshll.u32 [#allocation3], 4
      %s412 = int_to_ptr.vmem [resolvable:$true] %s411
      %414 = dma.vmem_to_hbm [thread:$0]  %s412, 16, %s7, [#allocation4]
    $region33: #{tpu_custom_call.1} parent=1 // pred_fallthru
      _
    // Predicated region
    $region34: #{tpu_custom_call.1} parent=1 // pred_check
      _
    $region35: #{tpu_custom_call.1} parent=1 // pred_check_branch
      %416 = sbr.rel (0) target = $region37
    $region36: #{tpu_custom_call.1} parent=1 // pred_region
      %417 = dma.done [#allocation4], 16
    $region37: #{tpu_custom_call.1} parent=1 // pred_fallthru
      _
    %418 = vsyncpa [#allocation4], 1

</llo_original>
